<compile_context>
chip_gen: v7x
topology: tpu7x:2x2x1
jax: 0.10.0
libtpu: 0.0.40
codegen_flags: <defaults>
</compile_context>

<pallas_src>
import jax
import jax.numpy as jnp
from jax.experimental import pallas as pl
from jax.experimental.pallas import tpu as pltpu

TILE_B = 256   # rows per grid step (full MXU tile on v6e/v7x)
OUT_PAD = 128  # fc3 output padded to a full lane width; logical width is 8


def qnet_kernel(x_ref, w1_ref, b1_ref, w2_ref, b2_ref, w3_ref, b3_ref, o_ref):
    # fc1 + ReLU  (bf16 in, f32 accumulate)
    h1 = jnp.dot(x_ref[...], w1_ref[...], preferred_element_type=jnp.float32)
    h1 = jnp.maximum(h1 + b1_ref[...], 0.0).astype(jnp.bfloat16)
    # fc2 + ReLU
    h2 = jnp.dot(h1, w2_ref[...], preferred_element_type=jnp.float32)
    h2 = jnp.maximum(h2 + b2_ref[...], 0.0).astype(jnp.bfloat16)
    # fc3 (padded to 128 lanes, no activation)
    out = jnp.dot(h2, w3_ref[...], preferred_element_type=jnp.float32)
    o_ref[...] = (out + b3_ref[...]).astype(o_ref.dtype)


def qnet_forward(x, params):
    """x: (B, 16) float.  Returns (B, 8) float32, identical math to the PyTorch Qnet."""
    w1, b1, w2, b2, w3p, b3p = params  # w3p/b3p are lane-padded to 128 outputs
    B = x.shape[0]
    n_blocks = pl.cdiv(B, TILE_B)
    B_pad = n_blocks * TILE_B
    if B_pad != B:
        x = jnp.pad(x, ((0, B_pad - B), (0, 0)))
    x = x.astype(jnp.bfloat16)

    out = pl.pallas_call(
        qnet_kernel,
        out_shape=jax.ShapeDtypeStruct((B_pad, OUT_PAD), jnp.float32),
        grid_spec=pltpu.PrefetchScalarGridSpec(
            num_scalar_prefetch=0,
            grid=(n_blocks,),
            in_specs=[
                pl.BlockSpec((TILE_B, 16), lambda i: (i, 0)),      # x stream
                pl.BlockSpec((16, 256), lambda i: (0, 0)),         # w1 (resident)
                pl.BlockSpec((1, 256), lambda i: (0, 0)),          # b1 (resident)
                pl.BlockSpec((256, 256), lambda i: (0, 0)),        # w2 (resident)
                pl.BlockSpec((1, 256), lambda i: (0, 0)),          # b2 (resident)
                pl.BlockSpec((256, OUT_PAD), lambda i: (0, 0)),    # w3 padded (resident)
                pl.BlockSpec((1, OUT_PAD), lambda i: (0, 0)),      # b3 padded (resident)
            ],
            out_specs=pl.BlockSpec((TILE_B, OUT_PAD), lambda i: (i, 0)),
        ),
        compiler_params=pltpu.CompilerParams(
            dimension_semantics=("parallel",),
        ),
    )(x, w1, b1, w2, b2, w3p, b3p)
    return out[:B, :8]


def init_params(key):
    # Mimics PyTorch Linear's U(-1/sqrt(fan_in), 1/sqrt(fan_in)).
    # Weights stored as (in_features, out_features) in bf16 so y = x @ W + b
    # matches PyTorch's x @ W_pt.T + b; biases stay f32 (added to f32 accumulator).
    def linear_init(k, fan_in, fan_out):
        kw, kb = jax.random.split(k)
        bound = 1.0 / jnp.sqrt(fan_in)
        w = jax.random.uniform(kw, (fan_in, fan_out), jnp.float32, -bound, bound)
        b = jax.random.uniform(kb, (1, fan_out), jnp.float32, -bound, bound)
        return w.astype(jnp.bfloat16), b

    k1, k2, k3 = jax.random.split(key, 3)
    w1, b1 = linear_init(k1, 16, 256)
    w2, b2 = linear_init(k2, 256, 256)
    w3, b3 = linear_init(k3, 256, 8)
    # Pad fc3 to 128 output lanes (zeros) for unmasked, lane-dense stores.
    w3p = jnp.zeros((256, OUT_PAD), jnp.bfloat16).at[:, :8].set(w3)
    b3p = jnp.zeros((1, OUT_PAD), jnp.float32).at[:, :8].set(b3)
    return (w1, b1, w2, b2, w3p, b3p)


if __name__ == "__main__":
    key = jax.random.PRNGKey(0)
    pkey, xkey = jax.random.split(key)
    params = init_params(pkey)

    B = 8  # small batch of observations, each a 16-dim state vector
    x = jax.random.normal(xkey, (B, 16), jnp.float32)

    out = qnet_forward(x, params)
    jax.block_until_ready(out)

    # Plain-JAX reference of the same math (same bf16 params, f32 accumulation).
    w1, b1, w2, b2, w3p, b3p = params
    xb = x.astype(jnp.bfloat16)
    ref = jnp.maximum(
        jnp.dot(xb, w1, preferred_element_type=jnp.float32) + b1, 0.0
    ).astype(jnp.bfloat16)
    ref = jnp.maximum(
        jnp.dot(ref, w2, preferred_element_type=jnp.float32) + b2, 0.0
    ).astype(jnp.bfloat16)
    ref = jnp.dot(ref, w3p, preferred_element_type=jnp.float32) + b3p
    ref = ref[:, :8]

    assert out.shape == (B, 8)
    assert jnp.allclose(out, ref, atol=1e-2, rtol=1e-2), (
        float(jnp.max(jnp.abs(out - ref)))
    )

    print("KERNEL_OK")
</pallas_src>

<mosaic_0001>
module attributes {stable_mosaic.version = 11 : i64} {
  func.func @qnet_kernel(%arg0: i32, %arg1: memref<256x16xbf16, #tpu.memory_space<vmem>>, %arg2: memref<16x256xbf16, #tpu.memory_space<vmem>>, %arg3: memref<1x256xf32, #tpu.memory_space<vmem>>, %arg4: memref<256x256xbf16, #tpu.memory_space<vmem>>, %arg5: memref<1x256xf32, #tpu.memory_space<vmem>>, %arg6: memref<256x128xbf16, #tpu.memory_space<vmem>>, %arg7: memref<1x128xf32, #tpu.memory_space<vmem>>, %arg8: memref<256x128xf32, #tpu.memory_space<vmem>>) attributes {dimension_semantics = [#tpu.dimension_semantics<parallel>], iteration_bounds = array<i64: 1>, scalar_prefetch = 0 : i64, scratch_operands = 0 : i64, tpu.core_type = #tpu.core_type<tc>, window_params = [{transform_indices = @transform_0, window_bounds = array<i64: 256, 16>}, {pipeline_mode = #tpu.pipeline_mode<synchronous>, transform_indices = @transform_1, window_bounds = array<i64: 16, 256>}, {pipeline_mode = #tpu.pipeline_mode<synchronous>, transform_indices = @transform_2, window_bounds = array<i64: 1, 256>}, {pipeline_mode = #tpu.pipeline_mode<synchronous>, transform_indices = @transform_3, window_bounds = array<i64: 256, 256>}, {pipeline_mode = #tpu.pipeline_mode<synchronous>, transform_indices = @transform_4, window_bounds = array<i64: 1, 256>}, {pipeline_mode = #tpu.pipeline_mode<synchronous>, transform_indices = @transform_5, window_bounds = array<i64: 256, 128>}, {pipeline_mode = #tpu.pipeline_mode<synchronous>, transform_indices = @transform_6, window_bounds = array<i64: 1, 128>}, {transform_indices = @transform_7, window_bounds = array<i64: 256, 128>}]} {
    %c0 = arith.constant 0 : index
    %c0_0 = arith.constant 0 : index
    %0 = vector.load %arg1[%c0, %c0_0] : memref<256x16xbf16, #tpu.memory_space<vmem>>, vector<256x16xbf16>
    %c0_1 = arith.constant 0 : index
    %c0_2 = arith.constant 0 : index
    %1 = vector.load %arg2[%c0_1, %c0_2] : memref<16x256xbf16, #tpu.memory_space<vmem>>, vector<16x256xbf16>
    %cst = arith.constant dense<0.000000e+00> : vector<256x256xf32>
    %2 = tpu.matmul %0, %1, %cst {dimension_numbers = #tpu.dot_dimension_numbers<[1], [0], [0], [1], [0, 0, 1, 1], [], []>} : vector<256x16xbf16>, vector<16x256xbf16>, vector<256x256xf32> -> vector<256x256xf32>
    %c0_3 = arith.constant 0 : index
    %c0_4 = arith.constant 0 : index
    %3 = vector.load %arg3[%c0_3, %c0_4] : memref<1x256xf32, #tpu.memory_space<vmem>>, vector<1x256xf32>
    %4 = vector.broadcast %3 : vector<1x256xf32> to vector<256x256xf32>
    %5 = arith.addf %2, %4 : vector<256x256xf32>
    %cst_5 = arith.constant 0.000000e+00 : f32
    %6 = vector.broadcast %cst_5 : f32 to vector<256x256xf32>
    %7 = arith.maximumf %5, %6 : vector<256x256xf32>
    %8 = arith.truncf %7 : vector<256x256xf32> to vector<256x256xbf16>
    %c0_6 = arith.constant 0 : index
    %c0_7 = arith.constant 0 : index
    %9 = vector.load %arg4[%c0_6, %c0_7] : memref<256x256xbf16, #tpu.memory_space<vmem>>, vector<256x256xbf16>
    %cst_8 = arith.constant dense<0.000000e+00> : vector<256x256xf32>
    %10 = tpu.matmul %8, %9, %cst_8 {dimension_numbers = #tpu.dot_dimension_numbers<[1], [0], [0], [1], [0, 0, 1, 1], [], []>} : vector<256x256xbf16>, vector<256x256xbf16>, vector<256x256xf32> -> vector<256x256xf32>
    %c0_9 = arith.constant 0 : index
    %c0_10 = arith.constant 0 : index
    %11 = vector.load %arg5[%c0_9, %c0_10] : memref<1x256xf32, #tpu.memory_space<vmem>>, vector<1x256xf32>
    %12 = vector.broadcast %11 : vector<1x256xf32> to vector<256x256xf32>
    %13 = arith.addf %10, %12 : vector<256x256xf32>
    %cst_11 = arith.constant 0.000000e+00 : f32
    %14 = vector.broadcast %cst_11 : f32 to vector<256x256xf32>
    %15 = arith.maximumf %13, %14 : vector<256x256xf32>
    %16 = arith.truncf %15 : vector<256x256xf32> to vector<256x256xbf16>
    %c0_12 = arith.constant 0 : index
    %c0_13 = arith.constant 0 : index
    %17 = vector.load %arg6[%c0_12, %c0_13] : memref<256x128xbf16, #tpu.memory_space<vmem>>, vector<256x128xbf16>
    %cst_14 = arith.constant dense<0.000000e+00> : vector<256x128xf32>
    %18 = tpu.matmul %16, %17, %cst_14 {dimension_numbers = #tpu.dot_dimension_numbers<[1], [0], [0], [1], [0, 0, 1, 1], [], []>} : vector<256x256xbf16>, vector<256x128xbf16>, vector<256x128xf32> -> vector<256x128xf32>
    %c0_15 = arith.constant 0 : index
    %c0_16 = arith.constant 0 : index
    %19 = vector.load %arg7[%c0_15, %c0_16] : memref<1x128xf32, #tpu.memory_space<vmem>>, vector<1x128xf32>
    %20 = vector.broadcast %19 : vector<1x128xf32> to vector<256x128xf32>
    %21 = arith.addf %18, %20 : vector<256x128xf32>
    %c0_17 = arith.constant 0 : index
    %c0_18 = arith.constant 0 : index
    %22 = vector.load %arg8[%c0_17, %c0_18] : memref<256x128xf32, #tpu.memory_space<vmem>>, vector<256x128xf32>
    tpu.vector_store %arg8[%c0_17, %c0_18], %21 {strides = array<i32>} : memref<256x128xf32, #tpu.memory_space<vmem>>, vector<256x128xf32>,
    return
  }
  func.func @transform_0(%arg0: i32) -> (i32, i32) {
    %c0_i32 = arith.constant 0 : i32
    %c0_i32_0 = arith.constant 0 : i32
    return %arg0, %c0_i32 : i32, i32
  }
  func.func @transform_1(%arg0: i32) -> (i32, i32) {
    %c0_i32 = arith.constant 0 : i32
    %c0_i32_0 = arith.constant 0 : i32
    %c0_i32_1 = arith.constant 0 : i32
    return %c0_i32, %c0_i32_0 : i32, i32
  }
  func.func @transform_2(%arg0: i32) -> (i32, i32) {
    %c0_i32 = arith.constant 0 : i32
    %c0_i32_0 = arith.constant 0 : i32
    %c0_i32_1 = arith.constant 0 : i32
    return %c0_i32, %c0_i32_0 : i32, i32
  }
  func.func @transform_3(%arg0: i32) -> (i32, i32) {
    %c0_i32 = arith.constant 0 : i32
    %c0_i32_0 = arith.constant 0 : i32
    %c0_i32_1 = arith.constant 0 : i32
    return %c0_i32, %c0_i32_0 : i32, i32
  }
  func.func @transform_4(%arg0: i32) -> (i32, i32) {
    %c0_i32 = arith.constant 0 : i32
    %c0_i32_0 = arith.constant 0 : i32
    %c0_i32_1 = arith.constant 0 : i32
    return %c0_i32, %c0_i32_0 : i32, i32
  }
  func.func @transform_5(%arg0: i32) -> (i32, i32) {
    %c0_i32 = arith.constant 0 : i32
    %c0_i32_0 = arith.constant 0 : i32
    %c0_i32_1 = arith.constant 0 : i32
    return %c0_i32, %c0_i32_0 : i32, i32
  }
  func.func @transform_6(%arg0: i32) -> (i32, i32) {
    %c0_i32 = arith.constant 0 : i32
    %c0_i32_0 = arith.constant 0 : i32
    %c0_i32_1 = arith.constant 0 : i32
    return %c0_i32, %c0_i32_0 : i32, i32
  }
  func.func @transform_7(%arg0: i32) -> (i32, i32) {
    %c0_i32 = arith.constant 0 : i32
    %c0_i32_0 = arith.constant 0 : i32
    return %arg0, %c0_i32 : i32, i32
  }
}

</mosaic_0001>

<llo_original>
// kernel: tpu_custom_call.1
$region0: #{tpu_custom_call.1}
  #allocation0 [shape = 'u32[]', space=smem, size = 0x4, offset = 0x4, fixed_abs, tag = 'smem constant byte address 0x4 - core index']
  #allocation1 [shape = 'u32[144,128]{1,0:T(1,128)}', space=vmem, size = 0x12000, scoped, tag = 'internal scratch']
  %s0 = inlined_call_operand.vmem [shape: bf16[256,16], index: 0, kind: input, shape index: {}]
  %s1 = inlined_call_operand.vmem [shape: bf16[16,256], index: 1, kind: input, shape index: {}]
  %s2 = inlined_call_operand.vmem [shape: f32[1,256], index: 2, kind: input, shape index: {}]
  %s3 = inlined_call_operand.hbm [shape: bf16[256,256], index: 3, kind: input, shape index: {}]
  %s4 = inlined_call_operand.vmem [shape: f32[1,256], index: 4, kind: input, shape index: {}]
  %s5 = inlined_call_operand.vmem [shape: bf16[256,128], index: 5, kind: input, shape index: {}]
  %s6 = inlined_call_operand.vmem [shape: f32[1,128], index: 6, kind: input, shape index: {}]
  %s7 = inlined_call_operand.hbm [shape: f32[256,128], index: 7, kind: output, shape index: {}]
  %s8 = sld [smem:[#allocation0]]
  $region42: #{tpu_custom_call.1} parent=0
    _
  %s10 = ssub.s32 1, %s8
  %s11 = scalar_select 0, %s10, %s8
  $region1: #{tpu_custom_call.1} parent=0
    #allocation2 [shape = 'u8[131072]{0}', space=vmem, size = 0x20000, scoped, tag = 'input window, operand 3, single buffered']
    #allocation3 [shape = 's32[1]{0}', space=sflag, size = 0x4, scoped, tag = 'scoped memory for tpu_custom_call.1']
    #allocation4 [shape = 's32[1]{0}', space=sflag, size = 0x4, scoped, tag = 'scoped memory for tpu_custom_call.1']
    #allocation5 [shape = 'u8[131072]{0}', space=vmem, size = 0x20000, scoped, tag = 'output window, operand 0, single buffered']
    %12 = vsyncpa [#allocation3], 0
    %13 = vsyncpa [#allocation4], 0
    // Predicated region
    $region2: #{tpu_custom_call.1} parent=1 // pred_check
      _
    $region3: #{tpu_custom_call.1} parent=1 // pred_check_branch
      %15 = sbr.rel (0) target = $region5
    $region4: #{tpu_custom_call.1} parent=1 // pred_region
      _
    $region5: #{tpu_custom_call.1} parent=1 // pred_fallthru
      _
    // Predicated region
    $region6: #{tpu_custom_call.1} parent=1 // pred_check
      _
    $region7: #{tpu_custom_call.1} parent=1 // pred_check_branch
      %17 = sbr.rel (0) target = $region9
    $region8: #{tpu_custom_call.1} parent=1 // pred_region
      _
    $region9: #{tpu_custom_call.1} parent=1 // pred_fallthru
      _
    // Predicated region
    $region10: #{tpu_custom_call.1} parent=1 // pred_check
      _
    $region11: #{tpu_custom_call.1} parent=1 // pred_check_branch
      %19 = sbr.rel (0) target = $region13
    $region12: #{tpu_custom_call.1} parent=1 // pred_region
      _
    $region13: #{tpu_custom_call.1} parent=1 // pred_fallthru
      _
    // Predicated region
    $region14: #{tpu_custom_call.1} parent=1 // pred_check
      _
    $region15: #{tpu_custom_call.1} parent=1 // pred_check_branch
      %21 = sbr.rel (0) target = $region17
    $region16: #{tpu_custom_call.1} parent=1 // pred_region
      %s23 = ssub.s32 4096, 4096
      %24 = vsyncadd [#allocation3], %s23
      %s25 = sshll.u32 [#allocation2], 4
      %s26 = int_to_ptr.vmem [resolvable:$true] %s25
      %31 = dma.hbm_to_vmem [thread:$0]  %s3, 4096, %s26, [#allocation3], 128, 128, 8
    $region17: #{tpu_custom_call.1} parent=1 // pred_fallthru
      _
    // Predicated region
    $region18: #{tpu_custom_call.1} parent=1 // pred_check
      _
    $region19: #{tpu_custom_call.1} parent=1 // pred_check_branch
      %33 = sbr.rel (0) target = $region21
    $region20: #{tpu_custom_call.1} parent=1 // pred_region
      _
    $region21: #{tpu_custom_call.1} parent=1 // pred_fallthru
      _
    // Predicated region
    $region22: #{tpu_custom_call.1} parent=1 // pred_check
      _
    $region23: #{tpu_custom_call.1} parent=1 // pred_check_branch
      %35 = sbr.rel (0) target = $region25
    $region24: #{tpu_custom_call.1} parent=1 // pred_region
      _
    $region25: #{tpu_custom_call.1} parent=1 // pred_fallthru
      _
    // Predicated region
    $region26: #{tpu_custom_call.1} parent=1 // pred_check
      _
    $region27: #{tpu_custom_call.1} parent=1 // pred_check_branch
      %37 = sbr.rel (0) target = $region29
    $region28: #{tpu_custom_call.1} parent=1 // pred_region
      _
    $region29: #{tpu_custom_call.1} parent=1 // pred_fallthru
      _
    // Predicated region
    $region30: #{tpu_custom_call.1} parent=1 // pred_check
      _
    $region31: #{tpu_custom_call.1} parent=1 // pred_check_branch
      %39 = sbr.rel (0) target = $region33
    $region32: #{tpu_custom_call.1} parent=1 // pred_region
      %40 = dma.done [#allocation3], 4096
    $region33: #{tpu_custom_call.1} parent=1 // pred_fallthru
      _
    %v42 = vld [vmem:[%s0] sm:$0xf]
    %v43 = vld [vmem:[%s0 + $0x4] sm:$0xf]
    %v44 = vld [vmem:[%s0 + $0x8] sm:$0xf]
    %v45 = vld [vmem:[%s0 + $0xc] sm:$0xf]
    %v46 = vld [vmem:[%s0 + $0x10] sm:$0xf]
    %v47 = vld [vmem:[%s0 + $0x14] sm:$0xf]
    %v48 = vld [vmem:[%s0 + $0x18] sm:$0xf]
    %v49 = vld [vmem:[%s0 + $0x1c] sm:$0xf]
    %v50 = vld [vmem:[%s0 + $0x20] sm:$0xf]
    %v51 = vld [vmem:[%s0 + $0x24] sm:$0xf]
    %v52 = vld [vmem:[%s0 + $0x28] sm:$0xf]
    %v53 = vld [vmem:[%s0 + $0x2c] sm:$0xf]
    %v54 = vld [vmem:[%s0 + $0x30] sm:$0xf]
    %v55 = vld [vmem:[%s0 + $0x34] sm:$0xf]
    %v56 = vld [vmem:[%s0 + $0x38] sm:$0xf]
    %v57 = vld [vmem:[%s0 + $0x3c] sm:$0xf]
    %v58 = vld [vmem:[%s0 + $0x40] sm:$0xf]
    %v59 = vld [vmem:[%s0 + $0x44] sm:$0xf]
    %v60 = vld [vmem:[%s0 + $0x48] sm:$0xf]
    %v61 = vld [vmem:[%s0 + $0x4c] sm:$0xf]
    %v62 = vld [vmem:[%s0 + $0x50] sm:$0xf]
    %v63 = vld [vmem:[%s0 + $0x54] sm:$0xf]
    %v64 = vld [vmem:[%s0 + $0x58] sm:$0xf]
    %v65 = vld [vmem:[%s0 + $0x5c] sm:$0xf]
    %v66 = vld [vmem:[%s0 + $0x60] sm:$0xf]
    %v67 = vld [vmem:[%s0 + $0x64] sm:$0xf]
    %v68 = vld [vmem:[%s0 + $0x68] sm:$0xf]
    %v69 = vld [vmem:[%s0 + $0x6c] sm:$0xf]
    %v70 = vld [vmem:[%s0 + $0x70] sm:$0xf]
    %v71 = vld [vmem:[%s0 + $0x74] sm:$0xf]
    %v72 = vld [vmem:[%s0 + $0x78] sm:$0xf]
    %v73 = vld [vmem:[%s0 + $0x7c] sm:$0xf]
    %v74 = vld [vmem:[%s1] sm:$0xff]
    %v75 = vld [vmem:[%s1 + $0x8] sm:$0xff]
    %v76 = vld [vmem:[%s2] sm:$0x3]
    %v78 = vlaneseq
    %v79 = vshrl.u32 %v78, 7
    %v80 = vsub.s32 0, %v79
    %v81 = vrot.slane %v76, %v80
    %v82 = vlaneseq
    %v83 = vshrl.u32 %v82, 7
    %v84 = vsub.s32 1, %v83
    %v85 = vrot.slane %v76, %v84
    %v120 = vunpack.c.l.b16 %v42
    %v121 = vunpack.c.l.b16 %v43
    %v122 = vunpack.c.l.b16 %v44
    %v123 = vunpack.c.l.b16 %v45
    %v124 = vunpack.c.l.b16 %v46
    %v125 = vunpack.c.l.b16 %v47
    %v126 = vunpack.c.l.b16 %v48
    %v127 = vunpack.c.l.b16 %v49
    %v128 = vunpack.c.l.b16 %v50
    %v129 = vunpack.c.l.b16 %v51
    %v130 = vunpack.c.l.b16 %v52
    %v131 = vunpack.c.l.b16 %v53
    %v132 = vunpack.c.l.b16 %v54
    %v133 = vunpack.c.l.b16 %v55
    %v134 = vunpack.c.l.b16 %v56
    %v135 = vunpack.c.l.b16 %v57
    %v136 = vunpack.c.l.b16 %v58
    %v137 = vunpack.c.l.b16 %v59
    %v138 = vunpack.c.l.b16 %v60
    %v139 = vunpack.c.l.b16 %v61
    %v140 = vunpack.c.l.b16 %v62
    %v141 = vunpack.c.l.b16 %v63
    %v142 = vunpack.c.l.b16 %v64
    %v143 = vunpack.c.l.b16 %v65
    %v144 = vunpack.c.l.b16 %v66
    %v145 = vunpack.c.l.b16 %v67
    %v146 = vunpack.c.l.b16 %v68
    %v147 = vunpack.c.l.b16 %v69
    %v148 = vunpack.c.l.b16 %v70
    %v149 = vunpack.c.l.b16 %v71
    %v150 = vunpack.c.l.b16 %v72
    %v151 = vunpack.c.l.b16 %v73
    %v152 = vpack.c.b16 %v121, %v120
    %v153 = vpack.c.b16 %v123, %v122
    %v154 = vpack.c.b16 %v125, %v124
    %v155 = vpack.c.b16 %v127, %v126
    %v156 = vpack.c.b16 %v129, %v128
    %v157 = vpack.c.b16 %v131, %v130
    %v158 = vpack.c.b16 %v133, %v132
    %v159 = vpack.c.b16 %v135, %v134
    %v160 = vpack.c.b16 %v137, %v136
    %v161 = vpack.c.b16 %v139, %v138
    %v162 = vpack.c.b16 %v141, %v140
    %v163 = vpack.c.b16 %v143, %v142
    %v164 = vpack.c.b16 %v145, %v144
    %v165 = vpack.c.b16 %v147, %v146
    %v166 = vpack.c.b16 %v149, %v148
    %v167 = vpack.c.b16 %v151, %v150
    %v170 = vunpack.c.l.b16 %v74
    %v171 = vunpack.c.h.b16 %v74
    %v172 = vunpack.c.l.b16 %v75
    %v173 = vunpack.c.h.b16 %v75
    %v174 = vpack.c.b16 %v172, %v170
    %v175 = vpack.c.b16 %v173, %v171
    %vm178 = vcmask 130048
    %v180 = vsel %vm178, %v152, 0
    %v183 = vsel %vm178, %v153, 0
    %v186 = vsel %vm178, %v154, 0
    %v189 = vsel %vm178, %v155, 0
    %v192 = vsel %vm178, %v156, 0
    %v195 = vsel %vm178, %v157, 0
    %v198 = vsel %vm178, %v158, 0
    %v201 = vsel %vm178, %v159, 0
    %v204 = vsel %vm178, %v160, 0
    %v207 = vsel %vm178, %v161, 0
    %v210 = vsel %vm178, %v162, 0
    %v213 = vsel %vm178, %v163, 0
    %v216 = vsel %vm178, %v164, 0
    %v219 = vsel %vm178, %v165, 0
    %v222 = vsel %vm178, %v166, 0
    %v225 = vsel %vm178, %v167, 0
    %227 = vmatprep.subr.bf16.mxu0 %v175
    %228 = vmatpush1.bf16.msra.mxu0 %v174
    %229 = vmatprep.subr.bf16.mxu0 0
    %230 = vmatpush1.bf16.msra.mxu0 0
    %231 = vmatprep.subr.bf16.mxu0 0
    %232 = vmatpush1.bf16.msra.mxu0 0
    %233 = vmatprep.subr.bf16.mxu0 0
    %234 = vmatpush1.bf16.msra.mxu0 0
    %235 = vmatprep.subr.bf16.mxu0 0
    %236 = vmatpush1.bf16.msra.mxu0 0
    %237 = vmatprep.subr.bf16.mxu0 0
    %238 = vmatpush1.bf16.msra.mxu0 0
    %239 = vmatprep.subr.bf16.mxu0 0
    %240 = vmatpush1.bf16.msra.mxu0 0
    %241 = vmatprep.subr.bf16.mxu0 0
    %242 = vmatpush1.bf16.msra.mxu0 0
    %243 = vmatprep.subr.bf16.mxu0 0
    %244 = vmatpush1.bf16.msra.mxu0 0
    %245 = vmatprep.subr.bf16.mxu0 0
    %246 = vmatpush1.bf16.msra.mxu0 0
    %247 = vmatprep.subr.bf16.mxu0 0
    %248 = vmatpush1.bf16.msra.mxu0 0
    %249 = vmatprep.subr.bf16.mxu0 0
    %250 = vmatpush1.bf16.msra.mxu0 0
    %251 = vmatprep.subr.bf16.mxu0 0
    %252 = vmatpush1.bf16.msra.mxu0 0
    %253 = vmatprep.subr.bf16.mxu0 0
    %254 = vmatpush1.bf16.msra.mxu0 0
    %255 = vmatprep.subr.bf16.mxu0 0
    %256 = vmatpush1.bf16.msra.mxu0 0
    %257 = vmatprep.subr.bf16.mxu0 0
    %258 = vmatpush1.bf16.msra.mxu0 0
    %259 = vmatprep.mubr.bf16.mxu0 0
    %260 = vmatmul.mubr.bf16.gmra.mrb[0].mxu0 %v180
    %v261 = vpop.f32.mrb[0].mxu0
    %v262 = vadd.f32 %v81, %v261
    %v263 = vpop.f32.mrb[0].mxu0
    %v264 = vadd.f32 %v85, %v263
    %v265 = vpop.f32.mrb[0].mxu0
    %v266 = vadd.f32 %v81, %v265
    %v267 = vpop.f32.mrb[0].mxu0
    %v268 = vadd.f32 %v85, %v267
    %269 = vmatprep.mubr.bf16.mxu0 0
    %270 = vmatmul.mubr.bf16.gmra.mrb[0].mxu0 %v183
    %v271 = vpop.f32.mrb[0].mxu0
    %v272 = vadd.f32 %v81, %v271
    %v273 = vpop.f32.mrb[0].mxu0
    %v274 = vadd.f32 %v85, %v273
    %v275 = vpop.f32.mrb[0].mxu0
    %v276 = vadd.f32 %v81, %v275
    %v277 = vpop.f32.mrb[0].mxu0
    %v278 = vadd.f32 %v85, %v277
    %279 = vmatprep.mubr.bf16.mxu0 0
    %280 = vmatmul.mubr.bf16.gmra.mrb[0].mxu0 %v186
    %v281 = vpop.f32.mrb[0].mxu0
    %v282 = vadd.f32 %v81, %v281
    %v283 = vpop.f32.mrb[0].mxu0
    %v284 = vadd.f32 %v85, %v283
    %v285 = vpop.f32.mrb[0].mxu0
    %v286 = vadd.f32 %v81, %v285
    %v287 = vpop.f32.mrb[0].mxu0
    %v288 = vadd.f32 %v85, %v287
    %289 = vmatprep.mubr.bf16.mxu0 0
    %290 = vmatmul.mubr.bf16.gmra.mrb[0].mxu0 %v189
    %v291 = vpop.f32.mrb[0].mxu0
    %v292 = vadd.f32 %v81, %v291
    %v293 = vpop.f32.mrb[0].mxu0
    %v294 = vadd.f32 %v85, %v293
    %v295 = vpop.f32.mrb[0].mxu0
    %v296 = vadd.f32 %v81, %v295
    %v297 = vpop.f32.mrb[0].mxu0
    %v298 = vadd.f32 %v85, %v297
    %299 = vmatprep.mubr.bf16.mxu0 0
    %300 = vmatmul.mubr.bf16.gmra.mrb[0].mxu0 %v192
    %v301 = vpop.f32.mrb[0].mxu0
    %v302 = vadd.f32 %v81, %v301
    %v303 = vpop.f32.mrb[0].mxu0
    %v304 = vadd.f32 %v85, %v303
    %v305 = vpop.f32.mrb[0].mxu0
    %v306 = vadd.f32 %v81, %v305
    %v307 = vpop.f32.mrb[0].mxu0
    %v308 = vadd.f32 %v85, %v307
    %309 = vmatprep.mubr.bf16.mxu0 0
    %310 = vmatmul.mubr.bf16.gmra.mrb[0].mxu0 %v195
    %v311 = vpop.f32.mrb[0].mxu0
    %v312 = vadd.f32 %v81, %v311
    %v313 = vpop.f32.mrb[0].mxu0
    %v314 = vadd.f32 %v85, %v313
    %v315 = vpop.f32.mrb[0].mxu0
    %v316 = vadd.f32 %v81, %v315
    %v317 = vpop.f32.mrb[0].mxu0
    %v318 = vadd.f32 %v85, %v317
    %319 = vmatprep.mubr.bf16.mxu0 0
    %320 = vmatmul.mubr.bf16.gmra.mrb[0].mxu0 %v198
    %v321 = vpop.f32.mrb[0].mxu0
    %v322 = vadd.f32 %v81, %v321
    %v323 = vpop.f32.mrb[0].mxu0
    %v324 = vadd.f32 %v85, %v323
    %v325 = vpop.f32.mrb[0].mxu0
    %v326 = vadd.f32 %v81, %v325
    %v327 = vpop.f32.mrb[0].mxu0
    %v328 = vadd.f32 %v85, %v327
    %329 = vmatprep.mubr.bf16.mxu0 0
    %330 = vmatmul.mubr.bf16.gmra.mrb[0].mxu0 %v201
    %v331 = vpop.f32.mrb[0].mxu0
    %v332 = vadd.f32 %v81, %v331
    %v333 = vpop.f32.mrb[0].mxu0
    %v334 = vadd.f32 %v85, %v333
    %v335 = vpop.f32.mrb[0].mxu0
    %v336 = vadd.f32 %v81, %v335
    %v337 = vpop.f32.mrb[0].mxu0
    %v338 = vadd.f32 %v85, %v337
    %339 = vmatprep.mubr.bf16.mxu0 0
    %340 = vmatmul.mubr.bf16.gmra.mrb[0].mxu0 %v204
    %v341 = vpop.f32.mrb[0].mxu0
    %v342 = vadd.f32 %v81, %v341
    %v343 = vpop.f32.mrb[0].mxu0
    %v344 = vadd.f32 %v85, %v343
    %v345 = vpop.f32.mrb[0].mxu0
    %v346 = vadd.f32 %v81, %v345
    %v347 = vpop.f32.mrb[0].mxu0
    %v348 = vadd.f32 %v85, %v347
    %349 = vmatprep.mubr.bf16.mxu0 0
    %350 = vmatmul.mubr.bf16.gmra.mrb[0].mxu0 %v207
    %v351 = vpop.f32.mrb[0].mxu0
    %v352 = vadd.f32 %v81, %v351
    %v353 = vpop.f32.mrb[0].mxu0
    %v354 = vadd.f32 %v85, %v353
    %v355 = vpop.f32.mrb[0].mxu0
    %v356 = vadd.f32 %v81, %v355
    %v357 = vpop.f32.mrb[0].mxu0
    %v358 = vadd.f32 %v85, %v357
    %359 = vmatprep.mubr.bf16.mxu0 0
    %360 = vmatmul.mubr.bf16.gmra.mrb[0].mxu0 %v210
    %v361 = vpop.f32.mrb[0].mxu0
    %v362 = vadd.f32 %v81, %v361
    %v363 = vpop.f32.mrb[0].mxu0
    %v364 = vadd.f32 %v85, %v363
    %v365 = vpop.f32.mrb[0].mxu0
    %v366 = vadd.f32 %v81, %v365
    %v367 = vpop.f32.mrb[0].mxu0
    %v368 = vadd.f32 %v85, %v367
    %369 = vmatprep.mubr.bf16.mxu0 0
    %370 = vmatmul.mubr.bf16.gmra.mrb[0].mxu0 %v213
    %v371 = vpop.f32.mrb[0].mxu0
    %v372 = vadd.f32 %v81, %v371
    %v373 = vpop.f32.mrb[0].mxu0
    %v374 = vadd.f32 %v85, %v373
    %v375 = vpop.f32.mrb[0].mxu0
    %v376 = vadd.f32 %v81, %v375
    %v377 = vpop.f32.mrb[0].mxu0
    %v378 = vadd.f32 %v85, %v377
    %379 = vmatprep.mubr.bf16.mxu0 0
    %380 = vmatmul.mubr.bf16.gmra.mrb[0].mxu0 %v216
    %v381 = vpop.f32.mrb[0].mxu0
    %v382 = vadd.f32 %v81, %v381
    %v383 = vpop.f32.mrb[0].mxu0
    %v384 = vadd.f32 %v85, %v383
    %v385 = vpop.f32.mrb[0].mxu0
    %v386 = vadd.f32 %v81, %v385
    %v387 = vpop.f32.mrb[0].mxu0
    %v388 = vadd.f32 %v85, %v387
    %389 = vmatprep.mubr.bf16.mxu0 0
    %390 = vmatmul.mubr.bf16.gmra.mrb[0].mxu0 %v219
    %v391 = vpop.f32.mrb[0].mxu0
    %v392 = vadd.f32 %v81, %v391
    %v393 = vpop.f32.mrb[0].mxu0
    %v394 = vadd.f32 %v85, %v393
    %v395 = vpop.f32.mrb[0].mxu0
    %v396 = vadd.f32 %v81, %v395
    %v397 = vpop.f32.mrb[0].mxu0
    %v398 = vadd.f32 %v85, %v397
    %399 = vmatprep.mubr.bf16.mxu0 0
    %400 = vmatmul.mubr.bf16.gmra.mrb[0].mxu0 %v222
    %v401 = vpop.f32.mrb[0].mxu0
    %v402 = vadd.f32 %v81, %v401
    %v403 = vpop.f32.mrb[0].mxu0
    %v404 = vadd.f32 %v85, %v403
    %v405 = vpop.f32.mrb[0].mxu0
    %v406 = vadd.f32 %v81, %v405
    %v407 = vpop.f32.mrb[0].mxu0
    %v408 = vadd.f32 %v85, %v407
    %409 = vmatprep.mubr.bf16.mxu0 0
    %410 = vmatmul.mubr.bf16.gmra.mrb[0].mxu0 %v225
    %v411 = vpop.f32.mrb[0].mxu0
    %v412 = vadd.f32 %v81, %v411
    %v413 = vpop.f32.mrb[0].mxu0
    %v414 = vadd.f32 %v85, %v413
    %v415 = vpop.f32.mrb[0].mxu0
    %v416 = vadd.f32 %v81, %v415
    %v417 = vpop.f32.mrb[0].mxu0
    %v418 = vadd.f32 %v85, %v417
    %419 = vdwg.mxu0
    %v420 = vmax.f32 %v262, 0.0
    %v421 = vmax.f32 %v264, 0.0
    %v422 = vmax.f32 %v266, 0.0
    %v423 = vmax.f32 %v268, 0.0
    %v424 = vmax.f32 %v272, 0.0
    %v425 = vmax.f32 %v274, 0.0
    %v426 = vmax.f32 %v276, 0.0
    %v427 = vmax.f32 %v278, 0.0
    %v428 = vmax.f32 %v282, 0.0
    %v429 = vmax.f32 %v284, 0.0
    %v430 = vmax.f32 %v286, 0.0
    %v431 = vmax.f32 %v288, 0.0
    %v432 = vmax.f32 %v292, 0.0
    %v433 = vmax.f32 %v294, 0.0
    %v434 = vmax.f32 %v296, 0.0
    %v435 = vmax.f32 %v298, 0.0
    %v436 = vmax.f32 %v302, 0.0
    %v437 = vmax.f32 %v304, 0.0
    %v438 = vmax.f32 %v306, 0.0
    %v439 = vmax.f32 %v308, 0.0
    %v440 = vmax.f32 %v312, 0.0
    %v441 = vmax.f32 %v314, 0.0
    %v442 = vmax.f32 %v316, 0.0
    %v443 = vmax.f32 %v318, 0.0
    %v444 = vmax.f32 %v322, 0.0
    %v445 = vmax.f32 %v324, 0.0
    %v446 = vmax.f32 %v326, 0.0
    %v447 = vmax.f32 %v328, 0.0
    %v448 = vmax.f32 %v332, 0.0
    %v449 = vmax.f32 %v334, 0.0
    %v450 = vmax.f32 %v336, 0.0
    %v451 = vmax.f32 %v338, 0.0
    %v452 = vmax.f32 %v342, 0.0
    %v453 = vmax.f32 %v344, 0.0
    %v454 = vmax.f32 %v346, 0.0
    %v455 = vmax.f32 %v348, 0.0
    %v456 = vmax.f32 %v352, 0.0
    %v457 = vmax.f32 %v354, 0.0
    %v458 = vmax.f32 %v356, 0.0
    %v459 = vmax.f32 %v358, 0.0
    %v460 = vmax.f32 %v362, 0.0
    %v461 = vmax.f32 %v364, 0.0
    %v462 = vmax.f32 %v366, 0.0
    %v463 = vmax.f32 %v368, 0.0
    %v464 = vmax.f32 %v372, 0.0
    %v465 = vmax.f32 %v374, 0.0
    %v466 = vmax.f32 %v376, 0.0
    %v467 = vmax.f32 %v378, 0.0
    %v468 = vmax.f32 %v382, 0.0
    %v469 = vmax.f32 %v384, 0.0
    %v470 = vmax.f32 %v386, 0.0
    %v471 = vmax.f32 %v388, 0.0
    %v472 = vmax.f32 %v392, 0.0
    %v473 = vmax.f32 %v394, 0.0
    %v474 = vmax.f32 %v396, 0.0
    %v475 = vmax.f32 %v398, 0.0
    %v476 = vmax.f32 %v402, 0.0
    %v477 = vmax.f32 %v404, 0.0
    %v478 = vmax.f32 %v406, 0.0
    %v479 = vmax.f32 %v408, 0.0
    %v480 = vmax.f32 %v412, 0.0
    %v481 = vmax.f32 %v414, 0.0
    %v482 = vmax.f32 %v416, 0.0
    %v483 = vmax.f32 %v418, 0.0
    %v484 = vpack.c.bf16 %v422, %v420
    %v485 = vpack.c.bf16 %v423, %v421
    %v486 = vpack.c.bf16 %v426, %v424
    %v487 = vpack.c.bf16 %v427, %v425
    %v488 = vpack.c.bf16 %v430, %v428
    %v489 = vpack.c.bf16 %v431, %v429
    %v490 = vpack.c.bf16 %v434, %v432
    %v491 = vpack.c.bf16 %v435, %v433
    %v492 = vpack.c.bf16 %v438, %v436
    %v493 = vpack.c.bf16 %v439, %v437
    %v494 = vpack.c.bf16 %v442, %v440
    %v495 = vpack.c.bf16 %v443, %v441
    %v496 = vpack.c.bf16 %v446, %v444
    %v497 = vpack.c.bf16 %v447, %v445
    %v498 = vpack.c.bf16 %v450, %v448
    %v499 = vpack.c.bf16 %v451, %v449
    %v500 = vpack.c.bf16 %v454, %v452
    %v501 = vpack.c.bf16 %v455, %v453
    %v502 = vpack.c.bf16 %v458, %v456
    %v503 = vpack.c.bf16 %v459, %v457
    %v504 = vpack.c.bf16 %v462, %v460
    %v505 = vpack.c.bf16 %v463, %v461
    %v506 = vpack.c.bf16 %v466, %v464
    %v507 = vpack.c.bf16 %v467, %v465
    %v508 = vpack.c.bf16 %v470, %v468
    %v509 = vpack.c.bf16 %v471, %v469
    %v510 = vpack.c.bf16 %v474, %v472
    %v511 = vpack.c.bf16 %v475, %v473
    %v512 = vpack.c.bf16 %v478, %v476
    %v513 = vpack.c.bf16 %v479, %v477
    %v514 = vpack.c.bf16 %v482, %v480
    %v515 = vpack.c.bf16 %v483, %v481
    %v516 = vld [vmem:[#allocation2] sm:$0xff]
    %v517 = vld [vmem:[#allocation2 + $0x8] sm:$0xff]
    %v518 = vld [vmem:[#allocation2 + $0x10] sm:$0xff]
    %v519 = vld [vmem:[#allocation2 + $0x18] sm:$0xff]
    %v520 = vld [vmem:[#allocation2 + $0x20] sm:$0xff]
    %v521 = vld [vmem:[#allocation2 + $0x28] sm:$0xff]
    %v522 = vld [vmem:[#allocation2 + $0x30] sm:$0xff]
    %v523 = vld [vmem:[#allocation2 + $0x38] sm:$0xff]
    %v524 = vld [vmem:[#allocation2 + $0x40] sm:$0xff]
    %v525 = vld [vmem:[#allocation2 + $0x48] sm:$0xff]
    %v526 = vld [vmem:[#allocation2 + $0x50] sm:$0xff]
    %v527 = vld [vmem:[#allocation2 + $0x58] sm:$0xff]
    %v528 = vld [vmem:[#allocation2 + $0x60] sm:$0xff]
    %v529 = vld [vmem:[#allocation2 + $0x68] sm:$0xff]
    %v530 = vld [vmem:[#allocation2 + $0x70] sm:$0xff]
    %v531 = vld [vmem:[#allocation2 + $0x78] sm:$0xff]
    %v532 = vld [vmem:[#allocation2 + $0x80] sm:$0xff]
    %v533 = vld [vmem:[#allocation2 + $0x88] sm:$0xff]
    %v534 = vld [vmem:[#allocation2 + $0x90] sm:$0xff]
    %v535 = vld [vmem:[#allocation2 + $0x98] sm:$0xff]
    %v536 = vld [vmem:[#allocation2 + $0xa0] sm:$0xff]
    %v537 = vld [vmem:[#allocation2 + $0xa8] sm:$0xff]
    %v538 = vld [vmem:[#allocation2 + $0xb0] sm:$0xff]
    %v539 = vld [vmem:[#allocation2 + $0xb8] sm:$0xff]
    %v540 = vld [vmem:[#allocation2 + $0xc0] sm:$0xff]
    %v541 = vld [vmem:[#allocation2 + $0xc8] sm:$0xff]
    %v542 = vld [vmem:[#allocation2 + $0xd0] sm:$0xff]
    %v543 = vld [vmem:[#allocation2 + $0xd8] sm:$0xff]
    %v544 = vld [vmem:[#allocation2 + $0xe0] sm:$0xff]
    %v545 = vld [vmem:[#allocation2 + $0xe8] sm:$0xff]
    %v546 = vld [vmem:[#allocation2 + $0xf0] sm:$0xff]
    %v547 = vld [vmem:[#allocation2 + $0xf8] sm:$0xff]
    %v548 = vld [vmem:[%s4] sm:$0x3]
    %v550 = vlaneseq
    %v551 = vshrl.u32 %v550, 7
    %v552 = vsub.s32 0, %v551
    %v553 = vrot.slane %v548, %v552
    %v554 = vlaneseq
    %v555 = vshrl.u32 %v554, 7
    %v556 = vsub.s32 1, %v555
    %v557 = vrot.slane %v548, %v556
    %v592 = vunpack.c.l.b16 %v516
    %v593 = vunpack.c.h.b16 %v516
    %v594 = vunpack.c.l.b16 %v517
    %v595 = vunpack.c.h.b16 %v517
    %v596 = vunpack.c.l.b16 %v518
    %v597 = vunpack.c.h.b16 %v518
    %v598 = vunpack.c.l.b16 %v519
    %v599 = vunpack.c.h.b16 %v519
    %v600 = vunpack.c.l.b16 %v520
    %v601 = vunpack.c.h.b16 %v520
    %v602 = vunpack.c.l.b16 %v521
    %v603 = vunpack.c.h.b16 %v521
    %v604 = vunpack.c.l.b16 %v522
    %v605 = vunpack.c.h.b16 %v522
    %v606 = vunpack.c.l.b16 %v523
    %v607 = vunpack.c.h.b16 %v523
    %v608 = vunpack.c.l.b16 %v524
    %v609 = vunpack.c.h.b16 %v524
    %v610 = vunpack.c.l.b16 %v525
    %v611 = vunpack.c.h.b16 %v525
    %v612 = vunpack.c.l.b16 %v526
    %v613 = vunpack.c.h.b16 %v526
    %v614 = vunpack.c.l.b16 %v527
    %v615 = vunpack.c.h.b16 %v527
    %v616 = vunpack.c.l.b16 %v528
    %v617 = vunpack.c.h.b16 %v528
    %v618 = vunpack.c.l.b16 %v529
    %v619 = vunpack.c.h.b16 %v529
    %v620 = vunpack.c.l.b16 %v530
    %v621 = vunpack.c.h.b16 %v530
    %v622 = vunpack.c.l.b16 %v531
    %v623 = vunpack.c.h.b16 %v531
    %v624 = vunpack.c.l.b16 %v532
    %v625 = vunpack.c.h.b16 %v532
    %v626 = vunpack.c.l.b16 %v533
    %v627 = vunpack.c.h.b16 %v533
    %v628 = vunpack.c.l.b16 %v534
    %v629 = vunpack.c.h.b16 %v534
    %v630 = vunpack.c.l.b16 %v535
    %v631 = vunpack.c.h.b16 %v535
    %v632 = vunpack.c.l.b16 %v536
    %v633 = vunpack.c.h.b16 %v536
    %v634 = vunpack.c.l.b16 %v537
    %v635 = vunpack.c.h.b16 %v537
    %v636 = vunpack.c.l.b16 %v538
    %v637 = vunpack.c.h.b16 %v538
    %v638 = vunpack.c.l.b16 %v539
    %v639 = vunpack.c.h.b16 %v539
    %v640 = vunpack.c.l.b16 %v540
    %v641 = vunpack.c.h.b16 %v540
    %v642 = vunpack.c.l.b16 %v541
    %v643 = vunpack.c.h.b16 %v541
    %v644 = vunpack.c.l.b16 %v542
    %v645 = vunpack.c.h.b16 %v542
    %v646 = vunpack.c.l.b16 %v543
    %v647 = vunpack.c.h.b16 %v543
    %v648 = vunpack.c.l.b16 %v544
    %v649 = vunpack.c.h.b16 %v544
    %v650 = vunpack.c.l.b16 %v545
    %v651 = vunpack.c.h.b16 %v545
    %v652 = vunpack.c.l.b16 %v546
    %v653 = vunpack.c.h.b16 %v546
    %v654 = vunpack.c.l.b16 %v547
    %v655 = vunpack.c.h.b16 %v547
    %v656 = vpack.c.b16 %v594, %v592
    %v657 = vpack.c.b16 %v595, %v593
    %v658 = vpack.c.b16 %v598, %v596
    %v659 = vpack.c.b16 %v599, %v597
    %v660 = vpack.c.b16 %v602, %v600
    %v661 = vpack.c.b16 %v603, %v601
    %v662 = vpack.c.b16 %v606, %v604
    %v663 = vpack.c.b16 %v607, %v605
    %v664 = vpack.c.b16 %v610, %v608
    %v665 = vpack.c.b16 %v611, %v609
    %v666 = vpack.c.b16 %v614, %v612
    %v667 = vpack.c.b16 %v615, %v613
    %v668 = vpack.c.b16 %v618, %v616
    %v669 = vpack.c.b16 %v619, %v617
    %v670 = vpack.c.b16 %v622, %v620
    %v671 = vpack.c.b16 %v623, %v621
    %v672 = vpack.c.b16 %v626, %v624
    %v673 = vpack.c.b16 %v627, %v625
    %v674 = vpack.c.b16 %v630, %v628
    %v675 = vpack.c.b16 %v631, %v629
    %v676 = vpack.c.b16 %v634, %v632
    %v677 = vpack.c.b16 %v635, %v633
    %v678 = vpack.c.b16 %v638, %v636
    %v679 = vpack.c.b16 %v639, %v637
    %v680 = vpack.c.b16 %v642, %v640
    %v681 = vpack.c.b16 %v643, %v641
    %v682 = vpack.c.b16 %v646, %v644
    %v683 = vpack.c.b16 %v647, %v645
    %v684 = vpack.c.b16 %v650, %v648
    %v685 = vpack.c.b16 %v651, %v649
    %v686 = vpack.c.b16 %v654, %v652
    %v687 = vpack.c.b16 %v655, %v653
    %720 = vmatprep.subr.bf16.mxu0 %v657
    %721 = vmatpush1.bf16.msra.mxu0 %v656
    %722 = vmatprep.subr.bf16.mxu0 %v659
    %723 = vmatpush1.bf16.msra.mxu0 %v658
    %724 = vmatprep.subr.bf16.mxu0 %v661
    %725 = vmatpush1.bf16.msra.mxu0 %v660
    %726 = vmatprep.subr.bf16.mxu0 %v663
    %727 = vmatpush1.bf16.msra.mxu0 %v662
    %728 = vmatprep.subr.bf16.mxu0 %v665
    %729 = vmatpush1.bf16.msra.mxu0 %v664
    %730 = vmatprep.subr.bf16.mxu0 %v667
    %731 = vmatpush1.bf16.msra.mxu0 %v666
    %732 = vmatprep.subr.bf16.mxu0 %v669
    %733 = vmatpush1.bf16.msra.mxu0 %v668
    %734 = vmatprep.subr.bf16.mxu0 %v671
    %735 = vmatpush1.bf16.msra.mxu0 %v670
    %736 = vmatprep.subr.bf16.mxu0 %v673
    %737 = vmatpush1.bf16.msra.mxu0 %v672
    %738 = vmatprep.subr.bf16.mxu0 %v675
    %739 = vmatpush1.bf16.msra.mxu0 %v674
    %740 = vmatprep.subr.bf16.mxu0 %v677
    %741 = vmatpush1.bf16.msra.mxu0 %v676
    %742 = vmatprep.subr.bf16.mxu0 %v679
    %743 = vmatpush1.bf16.msra.mxu0 %v678
    %744 = vmatprep.subr.bf16.mxu0 %v681
    %745 = vmatpush1.bf16.msra.mxu0 %v680
    %746 = vmatprep.subr.bf16.mxu0 %v683
    %747 = vmatpush1.bf16.msra.mxu0 %v682
    %748 = vmatprep.subr.bf16.mxu0 %v685
    %749 = vmatpush1.bf16.msra.mxu0 %v684
    %750 = vmatprep.subr.bf16.mxu0 %v687
    %751 = vmatpush1.bf16.msra.mxu0 %v686
    %752 = vmatprep.mubr.bf16.mxu0 %v485
    %753 = vmatmul.mubr.bf16.gmra.mrb[0].mxu0 %v484
    %v754 = vpop.f32.mrb[0].mxu0
    %v755 = vadd.f32 %v553, %v754
    %v756 = vpop.f32.mrb[0].mxu0
    %v757 = vadd.f32 %v557, %v756
    %v758 = vpop.f32.mrb[0].mxu0
    %v759 = vadd.f32 %v553, %v758
    %v760 = vpop.f32.mrb[0].mxu0
    %v761 = vadd.f32 %v557, %v760
    %762 = vmatprep.mubr.bf16.mxu0 %v487
    %763 = vmatmul.mubr.bf16.gmra.mrb[0].mxu0 %v486
    %v764 = vpop.f32.mrb[0].mxu0
    %v765 = vadd.f32 %v553, %v764
    %v766 = vpop.f32.mrb[0].mxu0
    %v767 = vadd.f32 %v557, %v766
    %v768 = vpop.f32.mrb[0].mxu0
    %v769 = vadd.f32 %v553, %v768
    %v770 = vpop.f32.mrb[0].mxu0
    %v771 = vadd.f32 %v557, %v770
    %772 = vmatprep.mubr.bf16.mxu0 %v489
    %773 = vmatmul.mubr.bf16.gmra.mrb[0].mxu0 %v488
    %v774 = vpop.f32.mrb[0].mxu0
    %v775 = vadd.f32 %v553, %v774
    %v776 = vpop.f32.mrb[0].mxu0
    %v777 = vadd.f32 %v557, %v776
    %v778 = vpop.f32.mrb[0].mxu0
    %v779 = vadd.f32 %v553, %v778
    %v780 = vpop.f32.mrb[0].mxu0
    %v781 = vadd.f32 %v557, %v780
    %782 = vmatprep.mubr.bf16.mxu0 %v491
    %783 = vmatmul.mubr.bf16.gmra.mrb[0].mxu0 %v490
    %v784 = vpop.f32.mrb[0].mxu0
    %v785 = vadd.f32 %v553, %v784
    %v786 = vpop.f32.mrb[0].mxu0
    %v787 = vadd.f32 %v557, %v786
    %v788 = vpop.f32.mrb[0].mxu0
    %v789 = vadd.f32 %v553, %v788
    %v790 = vpop.f32.mrb[0].mxu0
    %v791 = vadd.f32 %v557, %v790
    %792 = vmatprep.mubr.bf16.mxu0 %v493
    %793 = vmatmul.mubr.bf16.gmra.mrb[0].mxu0 %v492
    %v794 = vpop.f32.mrb[0].mxu0
    %v795 = vadd.f32 %v553, %v794
    %v796 = vpop.f32.mrb[0].mxu0
    %v797 = vadd.f32 %v557, %v796
    %v798 = vpop.f32.mrb[0].mxu0
    %v799 = vadd.f32 %v553, %v798
    %v800 = vpop.f32.mrb[0].mxu0
    %v801 = vadd.f32 %v557, %v800
    %802 = vmatprep.mubr.bf16.mxu0 %v495
    %803 = vmatmul.mubr.bf16.gmra.mrb[0].mxu0 %v494
    %v804 = vpop.f32.mrb[0].mxu0
    %v805 = vadd.f32 %v553, %v804
    %v806 = vpop.f32.mrb[0].mxu0
    %v807 = vadd.f32 %v557, %v806
    %v808 = vpop.f32.mrb[0].mxu0
    %v809 = vadd.f32 %v553, %v808
    %v810 = vpop.f32.mrb[0].mxu0
    %v811 = vadd.f32 %v557, %v810
    %812 = vmatprep.mubr.bf16.mxu0 %v497
    %813 = vmatmul.mubr.bf16.gmra.mrb[0].mxu0 %v496
    %v814 = vpop.f32.mrb[0].mxu0
    %v815 = vadd.f32 %v553, %v814
    %v816 = vpop.f32.mrb[0].mxu0
    %v817 = vadd.f32 %v557, %v816
    %v818 = vpop.f32.mrb[0].mxu0
    %v819 = vadd.f32 %v553, %v818
    %v820 = vpop.f32.mrb[0].mxu0
    %v821 = vadd.f32 %v557, %v820
    %822 = vmatprep.mubr.bf16.mxu0 %v499
    %823 = vmatmul.mubr.bf16.gmra.mrb[0].mxu0 %v498
    %v824 = vpop.f32.mrb[0].mxu0
    %v825 = vadd.f32 %v553, %v824
    %v826 = vpop.f32.mrb[0].mxu0
    %v827 = vadd.f32 %v557, %v826
    %v828 = vpop.f32.mrb[0].mxu0
    %v829 = vadd.f32 %v553, %v828
    %v830 = vpop.f32.mrb[0].mxu0
    %v831 = vadd.f32 %v557, %v830
    %832 = vmatprep.mubr.bf16.mxu0 %v501
    %833 = vmatmul.mubr.bf16.gmra.mrb[0].mxu0 %v500
    %v834 = vpop.f32.mrb[0].mxu0
    %v835 = vadd.f32 %v553, %v834
    %v836 = vpop.f32.mrb[0].mxu0
    %v837 = vadd.f32 %v557, %v836
    %v838 = vpop.f32.mrb[0].mxu0
    %v839 = vadd.f32 %v553, %v838
    %v840 = vpop.f32.mrb[0].mxu0
    %v841 = vadd.f32 %v557, %v840
    %842 = vmatprep.mubr.bf16.mxu0 %v503
    %843 = vmatmul.mubr.bf16.gmra.mrb[0].mxu0 %v502
    %v844 = vpop.f32.mrb[0].mxu0
    %v845 = vadd.f32 %v553, %v844
    %v846 = vpop.f32.mrb[0].mxu0
    %v847 = vadd.f32 %v557, %v846
    %v848 = vpop.f32.mrb[0].mxu0
    %v849 = vadd.f32 %v553, %v848
    %v850 = vpop.f32.mrb[0].mxu0
    %v851 = vadd.f32 %v557, %v850
    %852 = vmatprep.mubr.bf16.mxu0 %v505
    %853 = vmatmul.mubr.bf16.gmra.mrb[0].mxu0 %v504
    %v854 = vpop.f32.mrb[0].mxu0
    %v855 = vadd.f32 %v553, %v854
    %v856 = vpop.f32.mrb[0].mxu0
    %v857 = vadd.f32 %v557, %v856
    %v858 = vpop.f32.mrb[0].mxu0
    %v859 = vadd.f32 %v553, %v858
    %v860 = vpop.f32.mrb[0].mxu0
    %v861 = vadd.f32 %v557, %v860
    %862 = vmatprep.mubr.bf16.mxu0 %v507
    %863 = vmatmul.mubr.bf16.gmra.mrb[0].mxu0 %v506
    %v864 = vpop.f32.mrb[0].mxu0
    %v865 = vadd.f32 %v553, %v864
    %v866 = vpop.f32.mrb[0].mxu0
    %v867 = vadd.f32 %v557, %v866
    %v868 = vpop.f32.mrb[0].mxu0
    %v869 = vadd.f32 %v553, %v868
    %v870 = vpop.f32.mrb[0].mxu0
    %v871 = vadd.f32 %v557, %v870
    %872 = vmatprep.mubr.bf16.mxu0 %v509
    %873 = vmatmul.mubr.bf16.gmra.mrb[0].mxu0 %v508
    %v874 = vpop.f32.mrb[0].mxu0
    %v875 = vadd.f32 %v553, %v874
    %v876 = vpop.f32.mrb[0].mxu0
    %v877 = vadd.f32 %v557, %v876
    %v878 = vpop.f32.mrb[0].mxu0
    %v879 = vadd.f32 %v553, %v878
    %v880 = vpop.f32.mrb[0].mxu0
    %v881 = vadd.f32 %v557, %v880
    %882 = vmatprep.mubr.bf16.mxu0 %v511
    %883 = vmatmul.mubr.bf16.gmra.mrb[0].mxu0 %v510
    %v884 = vpop.f32.mrb[0].mxu0
    %v885 = vadd.f32 %v553, %v884
    %v886 = vpop.f32.mrb[0].mxu0
    %v887 = vadd.f32 %v557, %v886
    %v888 = vpop.f32.mrb[0].mxu0
    %v889 = vadd.f32 %v553, %v888
    %v890 = vpop.f32.mrb[0].mxu0
    %v891 = vadd.f32 %v557, %v890
    %892 = vmatprep.mubr.bf16.mxu0 %v513
    %893 = vmatmul.mubr.bf16.gmra.mrb[0].mxu0 %v512
    %v894 = vpop.f32.mrb[0].mxu0
    %v895 = vadd.f32 %v553, %v894
    %v896 = vpop.f32.mrb[0].mxu0
    %v897 = vadd.f32 %v557, %v896
    %v898 = vpop.f32.mrb[0].mxu0
    %v899 = vadd.f32 %v553, %v898
    %v900 = vpop.f32.mrb[0].mxu0
    %v901 = vadd.f32 %v557, %v900
    %902 = vmatprep.mubr.bf16.mxu0 %v515
    %903 = vmatmul.mubr.bf16.gmra.mrb[0].mxu0 %v514
    %v904 = vpop.f32.mrb[0].mxu0
    %v905 = vadd.f32 %v553, %v904
    %v906 = vpop.f32.mrb[0].mxu0
    %v907 = vadd.f32 %v557, %v906
    %v908 = vpop.f32.mrb[0].mxu0
    %v909 = vadd.f32 %v553, %v908
    %v910 = vpop.f32.mrb[0].mxu0
    %v911 = vadd.f32 %v557, %v910
    %912 = vdwg.mxu0
    %v913 = vmax.f32 %v755, 0.0
    %v914 = vmax.f32 %v757, 0.0
    %v915 = vmax.f32 %v759, 0.0
    %v916 = vmax.f32 %v761, 0.0
    %v917 = vmax.f32 %v765, 0.0
    %v918 = vmax.f32 %v767, 0.0
    %v919 = vmax.f32 %v769, 0.0
    %v920 = vmax.f32 %v771, 0.0
    %v921 = vmax.f32 %v775, 0.0
    %v922 = vmax.f32 %v777, 0.0
    %v923 = vmax.f32 %v779, 0.0
    %v924 = vmax.f32 %v781, 0.0
    %v925 = vmax.f32 %v785, 0.0
    %v926 = vmax.f32 %v787, 0.0
    %v927 = vmax.f32 %v789, 0.0
    %v928 = vmax.f32 %v791, 0.0
    %v929 = vmax.f32 %v795, 0.0
    %v930 = vmax.f32 %v797, 0.0
    %v931 = vmax.f32 %v799, 0.0
    %v932 = vmax.f32 %v801, 0.0
    %v933 = vmax.f32 %v805, 0.0
    %v934 = vmax.f32 %v807, 0.0
    %v935 = vmax.f32 %v809, 0.0
    %v936 = vmax.f32 %v811, 0.0
    %v937 = vmax.f32 %v815, 0.0
    %v938 = vmax.f32 %v817, 0.0
    %v939 = vmax.f32 %v819, 0.0
    %v940 = vmax.f32 %v821, 0.0
    %v941 = vmax.f32 %v825, 0.0
    %v942 = vmax.f32 %v827, 0.0
    %v943 = vmax.f32 %v829, 0.0
    %v944 = vmax.f32 %v831, 0.0
    %v945 = vmax.f32 %v835, 0.0
    %v946 = vmax.f32 %v837, 0.0
    %v947 = vmax.f32 %v839, 0.0
    %v948 = vmax.f32 %v841, 0.0
    %v949 = vmax.f32 %v845, 0.0
    %v950 = vmax.f32 %v847, 0.0
    %v951 = vmax.f32 %v849, 0.0
    %v952 = vmax.f32 %v851, 0.0
    %v953 = vmax.f32 %v855, 0.0
    %v954 = vmax.f32 %v857, 0.0
    %v955 = vmax.f32 %v859, 0.0
    %v956 = vmax.f32 %v861, 0.0
    %v957 = vmax.f32 %v865, 0.0
    %v958 = vmax.f32 %v867, 0.0
    %v959 = vmax.f32 %v869, 0.0
    %v960 = vmax.f32 %v871, 0.0
    %v961 = vmax.f32 %v875, 0.0
    %v962 = vmax.f32 %v877, 0.0
    %v963 = vmax.f32 %v879, 0.0
    %v964 = vmax.f32 %v881, 0.0
    %v965 = vmax.f32 %v885, 0.0
    %v966 = vmax.f32 %v887, 0.0
    %v967 = vmax.f32 %v889, 0.0
    %v968 = vmax.f32 %v891, 0.0
    %v969 = vmax.f32 %v895, 0.0
    %v970 = vmax.f32 %v897, 0.0
    %v971 = vmax.f32 %v899, 0.0
    %v972 = vmax.f32 %v901, 0.0
    %v973 = vmax.f32 %v905, 0.0
    %v974 = vmax.f32 %v907, 0.0
    %v975 = vmax.f32 %v909, 0.0
    %v976 = vmax.f32 %v911, 0.0
    %v977 = vpack.c.bf16 %v915, %v913
    %v978 = vpack.c.bf16 %v916, %v914
    %v979 = vpack.c.bf16 %v919, %v917
    %v980 = vpack.c.bf16 %v920, %v918
    %v981 = vpack.c.bf16 %v923, %v921
    %v982 = vpack.c.bf16 %v924, %v922
    %v983 = vpack.c.bf16 %v927, %v925
    %v984 = vpack.c.bf16 %v928, %v926
    %v985 = vpack.c.bf16 %v931, %v929
    %v986 = vpack.c.bf16 %v932, %v930
    %v987 = vpack.c.bf16 %v935, %v933
    %v988 = vpack.c.bf16 %v936, %v934
    %v989 = vpack.c.bf16 %v939, %v937
    %v990 = vpack.c.bf16 %v940, %v938
    %v991 = vpack.c.bf16 %v943, %v941
    %v992 = vpack.c.bf16 %v944, %v942
    %v993 = vpack.c.bf16 %v947, %v945
    %v994 = vpack.c.bf16 %v948, %v946
    %v995 = vpack.c.bf16 %v951, %v949
    %v996 = vpack.c.bf16 %v952, %v950
    %v997 = vpack.c.bf16 %v955, %v953
    %v998 = vpack.c.bf16 %v956, %v954
    %v999 = vpack.c.bf16 %v959, %v957
    %v1000 = vpack.c.bf16 %v960, %v958
    %v1001 = vpack.c.bf16 %v963, %v961
    %v1002 = vpack.c.bf16 %v964, %v962
    %v1003 = vpack.c.bf16 %v967, %v965
    %v1004 = vpack.c.bf16 %v968, %v966
    %v1005 = vpack.c.bf16 %v971, %v969
    %v1006 = vpack.c.bf16 %v972, %v970
    %v1007 = vpack.c.bf16 %v975, %v973
    %v1008 = vpack.c.bf16 %v976, %v974
    %v1009 = vld [vmem:[%s5] sm:$0xf]
    %v1010 = vld [vmem:[%s5 + $0x4] sm:$0xf]
    %v1011 = vld [vmem:[%s5 + $0x8] sm:$0xf]
    %v1012 = vld [vmem:[%s5 + $0xc] sm:$0xf]
    %v1013 = vld [vmem:[%s5 + $0x10] sm:$0xf]
    %v1014 = vld [vmem:[%s5 + $0x14] sm:$0xf]
    %v1015 = vld [vmem:[%s5 + $0x18] sm:$0xf]
    %v1016 = vld [vmem:[%s5 + $0x1c] sm:$0xf]
    %v1017 = vld [vmem:[%s5 + $0x20] sm:$0xf]
    %v1018 = vld [vmem:[%s5 + $0x24] sm:$0xf]
    %v1019 = vld [vmem:[%s5 + $0x28] sm:$0xf]
    %v1020 = vld [vmem:[%s5 + $0x2c] sm:$0xf]
    %v1021 = vld [vmem:[%s5 + $0x30] sm:$0xf]
    %v1022 = vld [vmem:[%s5 + $0x34] sm:$0xf]
    %v1023 = vld [vmem:[%s5 + $0x38] sm:$0xf]
    %v1024 = vld [vmem:[%s5 + $0x3c] sm:$0xf]
    %v1025 = vld [vmem:[%s5 + $0x40] sm:$0xf]
    %v1026 = vld [vmem:[%s5 + $0x44] sm:$0xf]
    %v1027 = vld [vmem:[%s5 + $0x48] sm:$0xf]
    %v1028 = vld [vmem:[%s5 + $0x4c] sm:$0xf]
    %v1029 = vld [vmem:[%s5 + $0x50] sm:$0xf]
    %v1030 = vld [vmem:[%s5 + $0x54] sm:$0xf]
    %v1031 = vld [vmem:[%s5 + $0x58] sm:$0xf]
    %v1032 = vld [vmem:[%s5 + $0x5c] sm:$0xf]
    %v1033 = vld [vmem:[%s5 + $0x60] sm:$0xf]
    %v1034 = vld [vmem:[%s5 + $0x64] sm:$0xf]
    %v1035 = vld [vmem:[%s5 + $0x68] sm:$0xf]
    %v1036 = vld [vmem:[%s5 + $0x6c] sm:$0xf]
    %v1037 = vld [vmem:[%s5 + $0x70] sm:$0xf]
    %v1038 = vld [vmem:[%s5 + $0x74] sm:$0xf]
    %v1039 = vld [vmem:[%s5 + $0x78] sm:$0xf]
    %v1040 = vld [vmem:[%s5 + $0x7c] sm:$0xf]
    %v1041 = vld [vmem:[%s6] sm:$0x1]
    %v1043 = vlaneseq
    %v1044 = vshrl.u32 %v1043, 7
    %v1045 = vsub.s32 0, %v1044
    %v1046 = vrot.slane %v1041, %v1045
    %v1080 = vunpack.c.l.b16 %v1009
    %v1081 = vunpack.c.l.b16 %v1010
    %v1082 = vunpack.c.l.b16 %v1011
    %v1083 = vunpack.c.l.b16 %v1012
    %v1084 = vunpack.c.l.b16 %v1013
    %v1085 = vunpack.c.l.b16 %v1014
    %v1086 = vunpack.c.l.b16 %v1015
    %v1087 = vunpack.c.l.b16 %v1016
    %v1088 = vunpack.c.l.b16 %v1017
    %v1089 = vunpack.c.l.b16 %v1018
    %v1090 = vunpack.c.l.b16 %v1019
    %v1091 = vunpack.c.l.b16 %v1020
    %v1092 = vunpack.c.l.b16 %v1021
    %v1093 = vunpack.c.l.b16 %v1022
    %v1094 = vunpack.c.l.b16 %v1023
    %v1095 = vunpack.c.l.b16 %v1024
    %v1096 = vunpack.c.l.b16 %v1025
    %v1097 = vunpack.c.l.b16 %v1026
    %v1098 = vunpack.c.l.b16 %v1027
    %v1099 = vunpack.c.l.b16 %v1028
    %v1100 = vunpack.c.l.b16 %v1029
    %v1101 = vunpack.c.l.b16 %v1030
    %v1102 = vunpack.c.l.b16 %v1031
    %v1103 = vunpack.c.l.b16 %v1032
    %v1104 = vunpack.c.l.b16 %v1033
    %v1105 = vunpack.c.l.b16 %v1034
    %v1106 = vunpack.c.l.b16 %v1035
    %v1107 = vunpack.c.l.b16 %v1036
    %v1108 = vunpack.c.l.b16 %v1037
    %v1109 = vunpack.c.l.b16 %v1038
    %v1110 = vunpack.c.l.b16 %v1039
    %v1111 = vunpack.c.l.b16 %v1040
    %v1112 = vpack.c.b16 %v1081, %v1080
    %v1113 = vpack.c.b16 %v1083, %v1082
    %v1114 = vpack.c.b16 %v1085, %v1084
    %v1115 = vpack.c.b16 %v1087, %v1086
    %v1116 = vpack.c.b16 %v1089, %v1088
    %v1117 = vpack.c.b16 %v1091, %v1090
    %v1118 = vpack.c.b16 %v1093, %v1092
    %v1119 = vpack.c.b16 %v1095, %v1094
    %v1120 = vpack.c.b16 %v1097, %v1096
    %v1121 = vpack.c.b16 %v1099, %v1098
    %v1122 = vpack.c.b16 %v1101, %v1100
    %v1123 = vpack.c.b16 %v1103, %v1102
    %v1124 = vpack.c.b16 %v1105, %v1104
    %v1125 = vpack.c.b16 %v1107, %v1106
    %v1126 = vpack.c.b16 %v1109, %v1108
    %v1127 = vpack.c.b16 %v1111, %v1110
    %1144 = vmatprep.subr.bf16.mxu0 0
    %1145 = vmatpush1.bf16.msra.mxu0 %v1112
    %1146 = vmatprep.subr.bf16.mxu0 0
    %1147 = vmatpush1.bf16.msra.mxu0 %v1113
    %1148 = vmatprep.subr.bf16.mxu0 0
    %1149 = vmatpush1.bf16.msra.mxu0 %v1114
    %1150 = vmatprep.subr.bf16.mxu0 0
    %1151 = vmatpush1.bf16.msra.mxu0 %v1115
    %1152 = vmatprep.subr.bf16.mxu0 0
    %1153 = vmatpush1.bf16.msra.mxu0 %v1116
    %1154 = vmatprep.subr.bf16.mxu0 0
    %1155 = vmatpush1.bf16.msra.mxu0 %v1117
    %1156 = vmatprep.subr.bf16.mxu0 0
    %1157 = vmatpush1.bf16.msra.mxu0 %v1118
    %1158 = vmatprep.subr.bf16.mxu0 0
    %1159 = vmatpush1.bf16.msra.mxu0 %v1119
    %1160 = vmatprep.subr.bf16.mxu0 0
    %1161 = vmatpush1.bf16.msra.mxu0 %v1120
    %1162 = vmatprep.subr.bf16.mxu0 0
    %1163 = vmatpush1.bf16.msra.mxu0 %v1121
    %1164 = vmatprep.subr.bf16.mxu0 0
    %1165 = vmatpush1.bf16.msra.mxu0 %v1122
    %1166 = vmatprep.subr.bf16.mxu0 0
    %1167 = vmatpush1.bf16.msra.mxu0 %v1123
    %1168 = vmatprep.subr.bf16.mxu0 0
    %1169 = vmatpush1.bf16.msra.mxu0 %v1124
    %1170 = vmatprep.subr.bf16.mxu0 0
    %1171 = vmatpush1.bf16.msra.mxu0 %v1125
    %1172 = vmatprep.subr.bf16.mxu0 0
    %1173 = vmatpush1.bf16.msra.mxu0 %v1126
    %1174 = vmatprep.subr.bf16.mxu0 0
    %1175 = vmatpush1.bf16.msra.mxu0 %v1127
    %1176 = vmatprep.mubr.bf16.mxu0 %v978
    %1177 = vmatmul.mubr.bf16.gmra.mrb[0].mxu0 %v977
    %v1178 = vpop.f32.mrb[0].mxu0
    %v1179 = vadd.f32 %v1046, %v1178
    %v1180 = vpop.f32.mrb[0].mxu0
    %v1181 = vpop.f32.mrb[0].mxu0
    %v1182 = vadd.f32 %v1046, %v1181
    %v1183 = vpop.f32.mrb[0].mxu0
    %1184 = vmatprep.mubr.bf16.mxu0 %v980
    %1185 = vmatmul.mubr.bf16.gmra.mrb[0].mxu0 %v979
    %v1186 = vpop.f32.mrb[0].mxu0
    %v1187 = vadd.f32 %v1046, %v1186
    %v1188 = vpop.f32.mrb[0].mxu0
    %v1189 = vpop.f32.mrb[0].mxu0
    %v1190 = vadd.f32 %v1046, %v1189
    %v1191 = vpop.f32.mrb[0].mxu0
    %1192 = vmatprep.mubr.bf16.mxu0 %v982
    %1193 = vmatmul.mubr.bf16.gmra.mrb[0].mxu0 %v981
    %v1194 = vpop.f32.mrb[0].mxu0
    %v1195 = vadd.f32 %v1046, %v1194
    %v1196 = vpop.f32.mrb[0].mxu0
    %v1197 = vpop.f32.mrb[0].mxu0
    %v1198 = vadd.f32 %v1046, %v1197
    %v1199 = vpop.f32.mrb[0].mxu0
    %1200 = vmatprep.mubr.bf16.mxu0 %v984
    %1201 = vmatmul.mubr.bf16.gmra.mrb[0].mxu0 %v983
    %v1202 = vpop.f32.mrb[0].mxu0
    %v1203 = vadd.f32 %v1046, %v1202
    %v1204 = vpop.f32.mrb[0].mxu0
    %v1205 = vpop.f32.mrb[0].mxu0
    %v1206 = vadd.f32 %v1046, %v1205
    %v1207 = vpop.f32.mrb[0].mxu0
    %1208 = vmatprep.mubr.bf16.mxu0 %v986
    %1209 = vmatmul.mubr.bf16.gmra.mrb[0].mxu0 %v985
    %v1210 = vpop.f32.mrb[0].mxu0
    %v1211 = vadd.f32 %v1046, %v1210
    %v1212 = vpop.f32.mrb[0].mxu0
    %v1213 = vpop.f32.mrb[0].mxu0
    %v1214 = vadd.f32 %v1046, %v1213
    %v1215 = vpop.f32.mrb[0].mxu0
    %1216 = vmatprep.mubr.bf16.mxu0 %v988
    %1217 = vmatmul.mubr.bf16.gmra.mrb[0].mxu0 %v987
    %v1218 = vpop.f32.mrb[0].mxu0
    %v1219 = vadd.f32 %v1046, %v1218
    %v1220 = vpop.f32.mrb[0].mxu0
    %v1221 = vpop.f32.mrb[0].mxu0
    %v1222 = vadd.f32 %v1046, %v1221
    %v1223 = vpop.f32.mrb[0].mxu0
    %1224 = vmatprep.mubr.bf16.mxu0 %v990
    %1225 = vmatmul.mubr.bf16.gmra.mrb[0].mxu0 %v989
    %v1226 = vpop.f32.mrb[0].mxu0
    %v1227 = vadd.f32 %v1046, %v1226
    %v1228 = vpop.f32.mrb[0].mxu0
    %v1229 = vpop.f32.mrb[0].mxu0
    %v1230 = vadd.f32 %v1046, %v1229
    %v1231 = vpop.f32.mrb[0].mxu0
    %1232 = vmatprep.mubr.bf16.mxu0 %v992
    %1233 = vmatmul.mubr.bf16.gmra.mrb[0].mxu0 %v991
    %v1234 = vpop.f32.mrb[0].mxu0
    %v1235 = vadd.f32 %v1046, %v1234
    %v1236 = vpop.f32.mrb[0].mxu0
    %v1237 = vpop.f32.mrb[0].mxu0
    %v1238 = vadd.f32 %v1046, %v1237
    %v1239 = vpop.f32.mrb[0].mxu0
    %1240 = vmatprep.mubr.bf16.mxu0 %v994
    %1241 = vmatmul.mubr.bf16.gmra.mrb[0].mxu0 %v993
    %v1242 = vpop.f32.mrb[0].mxu0
    %v1243 = vadd.f32 %v1046, %v1242
    %v1244 = vpop.f32.mrb[0].mxu0
    %v1245 = vpop.f32.mrb[0].mxu0
    %v1246 = vadd.f32 %v1046, %v1245
    %v1247 = vpop.f32.mrb[0].mxu0
    %1248 = vmatprep.mubr.bf16.mxu0 %v996
    %1249 = vmatmul.mubr.bf16.gmra.mrb[0].mxu0 %v995
    %v1250 = vpop.f32.mrb[0].mxu0
    %v1251 = vadd.f32 %v1046, %v1250
    %v1252 = vpop.f32.mrb[0].mxu0
    %v1253 = vpop.f32.mrb[0].mxu0
    %v1254 = vadd.f32 %v1046, %v1253
    %v1255 = vpop.f32.mrb[0].mxu0
    %1256 = vmatprep.mubr.bf16.mxu0 %v998
    %1257 = vmatmul.mubr.bf16.gmra.mrb[0].mxu0 %v997
    %v1258 = vpop.f32.mrb[0].mxu0
    %v1259 = vadd.f32 %v1046, %v1258
    %v1260 = vpop.f32.mrb[0].mxu0
    %v1261 = vpop.f32.mrb[0].mxu0
    %v1262 = vadd.f32 %v1046, %v1261
    %v1263 = vpop.f32.mrb[0].mxu0
    %1264 = vmatprep.mubr.bf16.mxu0 %v1000
    %1265 = vmatmul.mubr.bf16.gmra.mrb[0].mxu0 %v999
    %v1266 = vpop.f32.mrb[0].mxu0
    %v1267 = vadd.f32 %v1046, %v1266
    %v1268 = vpop.f32.mrb[0].mxu0
    %v1269 = vpop.f32.mrb[0].mxu0
    %v1270 = vadd.f32 %v1046, %v1269
    %v1271 = vpop.f32.mrb[0].mxu0
    %1272 = vmatprep.mubr.bf16.mxu0 %v1002
    %1273 = vmatmul.mubr.bf16.gmra.mrb[0].mxu0 %v1001
    %v1274 = vpop.f32.mrb[0].mxu0
    %v1275 = vadd.f32 %v1046, %v1274
    %v1276 = vpop.f32.mrb[0].mxu0
    %v1277 = vpop.f32.mrb[0].mxu0
    %v1278 = vadd.f32 %v1046, %v1277
    %v1279 = vpop.f32.mrb[0].mxu0
    %1280 = vmatprep.mubr.bf16.mxu0 %v1004
    %1281 = vmatmul.mubr.bf16.gmra.mrb[0].mxu0 %v1003
    %v1282 = vpop.f32.mrb[0].mxu0
    %v1283 = vadd.f32 %v1046, %v1282
    %v1284 = vpop.f32.mrb[0].mxu0
    %v1285 = vpop.f32.mrb[0].mxu0
    %v1286 = vadd.f32 %v1046, %v1285
    %v1287 = vpop.f32.mrb[0].mxu0
    %1288 = vmatprep.mubr.bf16.mxu0 %v1006
    %1289 = vmatmul.mubr.bf16.gmra.mrb[0].mxu0 %v1005
    %v1290 = vpop.f32.mrb[0].mxu0
    %v1291 = vadd.f32 %v1046, %v1290
    %v1292 = vpop.f32.mrb[0].mxu0
    %v1293 = vpop.f32.mrb[0].mxu0
    %v1294 = vadd.f32 %v1046, %v1293
    %v1295 = vpop.f32.mrb[0].mxu0
    %1296 = vmatprep.mubr.bf16.mxu0 %v1008
    %1297 = vmatmul.mubr.bf16.gmra.mrb[0].mxu0 %v1007
    %v1298 = vpop.f32.mrb[0].mxu0
    %v1299 = vadd.f32 %v1046, %v1298
    %v1300 = vpop.f32.mrb[0].mxu0
    %v1301 = vpop.f32.mrb[0].mxu0
    %v1302 = vadd.f32 %v1046, %v1301
    %v1303 = vpop.f32.mrb[0].mxu0
    %1304 = vdwg.mxu0
    %1305 = vst [vmem:[#allocation5] sm:$0xff] %v1179
    %1306 = vst [vmem:[#allocation5 + $0x8] sm:$0xff] %v1182
    %1307 = vst [vmem:[#allocation5 + $0x10] sm:$0xff] %v1187
    %1308 = vst [vmem:[#allocation5 + $0x18] sm:$0xff] %v1190
    %1309 = vst [vmem:[#allocation5 + $0x20] sm:$0xff] %v1195
    %1310 = vst [vmem:[#allocation5 + $0x28] sm:$0xff] %v1198
    %1311 = vst [vmem:[#allocation5 + $0x30] sm:$0xff] %v1203
    %1312 = vst [vmem:[#allocation5 + $0x38] sm:$0xff] %v1206
    %1313 = vst [vmem:[#allocation5 + $0x40] sm:$0xff] %v1211
    %1314 = vst [vmem:[#allocation5 + $0x48] sm:$0xff] %v1214
    %1315 = vst [vmem:[#allocation5 + $0x50] sm:$0xff] %v1219
    %1316 = vst [vmem:[#allocation5 + $0x58] sm:$0xff] %v1222
    %1317 = vst [vmem:[#allocation5 + $0x60] sm:$0xff] %v1227
    %1318 = vst [vmem:[#allocation5 + $0x68] sm:$0xff] %v1230
    %1319 = vst [vmem:[#allocation5 + $0x70] sm:$0xff] %v1235
    %1320 = vst [vmem:[#allocation5 + $0x78] sm:$0xff] %v1238
    %1321 = vst [vmem:[#allocation5 + $0x80] sm:$0xff] %v1243
    %1322 = vst [vmem:[#allocation5 + $0x88] sm:$0xff] %v1246
    %1323 = vst [vmem:[#allocation5 + $0x90] sm:$0xff] %v1251
    %1324 = vst [vmem:[#allocation5 + $0x98] sm:$0xff] %v1254
    %1325 = vst [vmem:[#allocation5 + $0xa0] sm:$0xff] %v1259
    %1326 = vst [vmem:[#allocation5 + $0xa8] sm:$0xff] %v1262
    %1327 = vst [vmem:[#allocation5 + $0xb0] sm:$0xff] %v1267
    %1328 = vst [vmem:[#allocation5 + $0xb8] sm:$0xff] %v1270
    %1329 = vst [vmem:[#allocation5 + $0xc0] sm:$0xff] %v1275
    %1330 = vst [vmem:[#allocation5 + $0xc8] sm:$0xff] %v1278
    %1331 = vst [vmem:[#allocation5 + $0xd0] sm:$0xff] %v1283
    %1332 = vst [vmem:[#allocation5 + $0xd8] sm:$0xff] %v1286
    %1333 = vst [vmem:[#allocation5 + $0xe0] sm:$0xff] %v1291
    %1334 = vst [vmem:[#allocation5 + $0xe8] sm:$0xff] %v1294
    %1335 = vst [vmem:[#allocation5 + $0xf0] sm:$0xff] %v1299
    %1336 = vst [vmem:[#allocation5 + $0xf8] sm:$0xff] %v1302
    // Predicated region
    $region34: #{tpu_custom_call.1} parent=1 // pred_check
      _
    $region35: #{tpu_custom_call.1} parent=1 // pred_check_branch
      %1338 = sbr.rel (0) target = $region37
    $region36: #{tpu_custom_call.1} parent=1 // pred_region
      %s1340 = ssub.s32 4096, 4096
      %1341 = vsyncadd [#allocation4], %s1340
      %s1342 = sshll.u32 [#allocation5], 4
      %s1343 = int_to_ptr.vmem [resolvable:$true] %s1342
      %1348 = dma.vmem_to_hbm [thread:$0]  %s1343, 4096, %s7, [#allocation4], 128, 128, 8
    $region37: #{tpu_custom_call.1} parent=1 // pred_fallthru
      _
    // Predicated region
    $region38: #{tpu_custom_call.1} parent=1 // pred_check
      _
    $region39: #{tpu_custom_call.1} parent=1 // pred_check_branch
      %1350 = sbr.rel (0) target = $region41
    $region40: #{tpu_custom_call.1} parent=1 // pred_region
      %1351 = dma.done [#allocation4], 4096
    $region41: #{tpu_custom_call.1} parent=1 // pred_fallthru
      _
    %1352 = vsyncpa [#allocation3], 1
    %1353 = vsyncpa [#allocation4], 1

</llo_original>
